<compile_context>
chip_gen: v6e
topology: v6e:2x2x1
jax: 0.10.0
libtpu: 0.0.40
codegen_flags: <defaults>
</compile_context>

<pallas_src>
import jax
import jax.numpy as jnp
from jax.experimental import pallas as pl
from jax.experimental.pallas import tpu as pltpu


def _round_up(x, m):
    return ((x + m - 1) // m) * m


def dqn_kernel(x_ref, w0_ref, b0_ref, w1_ref, b1_ref, wp_ref, bp_ref, o_ref):
    # x_ref:  (IN_P, TILE_N)  bf16          (lane axis = batch)
    # w*_ref: (out_pad, in_pad) bf16,  b*_ref: (out_pad, 1) f32
    # o_ref:  (OUT_P, TILE_N) bf16
    x = x_ref[...]

    # RNN layer 0 at t=0 (h_prev = 0): h0 = tanh(W_ih0 @ x + (b_ih0 + b_hh0))
    z0 = jnp.dot(w0_ref[...], x, preferred_element_type=jnp.float32) + b0_ref[...]
    h0 = jnp.tanh(z0.astype(jnp.bfloat16))          # bf16 EUP (2x rate on v6e/v7x)

    # RNN layer 1 at t=0 (h_prev = 0): h1 = tanh(W_ih1 @ h0 + (b_ih1 + b_hh1))
    z1 = jnp.dot(w1_ref[...], h0, preferred_element_type=jnp.float32) + b1_ref[...]
    h1 = jnp.tanh(z1.astype(jnp.bfloat16))

    # predictor (Linear) + Sigmoid; final sigmoid kept in f32 (only OUT_P rows, negligible).
    zp = jnp.dot(wp_ref[...], h1, preferred_element_type=jnp.float32) + bp_ref[...]
    o_ref[...] = jax.nn.sigmoid(zp).astype(o_ref.dtype)


def dqn_forward(x, params, n_inputs, n_outputs, tile_n=4096):
    """x: any array whose size is a multiple of n_inputs (mirrors x.view(1,-1,n_inputs))."""
    xf = x.reshape(-1, n_inputs)
    N = xf.shape[0]
    w0, b0, w1, b1, wp, bp = params  # weights (out_feat, in_feat) f32, biases (out_feat,) f32
    hidden = w0.shape[0]

    # Padded feature dims: 16-sublane multiples only (bf16 packing). No 128-padding of
    # hidden — blocks equal the full padded arrays, so the (8,128) rule is satisfied and
    # the MXU does not need K/M = 128 here.
    IN_P = _round_up(n_inputs, 16)
    H_P = _round_up(hidden, 16)
    OUT_P = _round_up(n_outputs, 16)

    # Lane tile over batch: always a multiple of 128 (lowering requirement).
    tile_n = max(128, 128 * (tile_n // 128))
    n_lanes = _round_up(max(N, 1), 128)
    if n_lanes <= tile_n:
        # Small batch fits in one tile; still split into 2 grid steps when >= 256 lanes so
        # the "parallel" axis can shard across both v7x TensorCores (no-op on v5e/v6e).
        tile_n = _round_up((n_lanes + 1) // 2, 128) if n_lanes >= 256 else n_lanes
    N_pad = _round_up(N, tile_n)
    grid_n = N_pad // tile_n

    # Lane-dense transposed, zero-padded operands. Transpose+pad+cast of x fuse into a
    # single XLA pass; zero padding is exact (tanh(0)=0 rows are sliced off below).
    xt = jnp.pad(xf.T.astype(jnp.float32),
                 ((0, IN_P - n_inputs), (0, N_pad - N))).astype(jnp.bfloat16)
    w0p = jnp.pad(w0, ((0, H_P - hidden), (0, IN_P - n_inputs))).astype(jnp.bfloat16)
    w1p = jnp.pad(w1, ((0, H_P - hidden), (0, H_P - hidden))).astype(jnp.bfloat16)
    wpp = jnp.pad(wp, ((0, OUT_P - n_outputs), (0, H_P - hidden))).astype(jnp.bfloat16)
    b0p = jnp.pad(b0.reshape(hidden, 1), ((0, H_P - hidden), (0, 0))).astype(jnp.float32)
    b1p = jnp.pad(b1.reshape(hidden, 1), ((0, H_P - hidden), (0, 0))).astype(jnp.float32)
    bpp = jnp.pad(bp.reshape(n_outputs, 1), ((0, OUT_P - n_outputs), (0, 0))).astype(jnp.float32)

    # Advisory cost: EUP/overhead dominated (tanh + sigmoid), not MXU dominated.
    flops = 2 * N_pad * (IN_P * H_P + H_P * H_P + H_P * OUT_P)
    transcendentals = N_pad * (2 * H_P + OUT_P)
    bytes_accessed = (
        2 * IN_P * N_pad                               # bf16 input
        + 2 * OUT_P * N_pad                            # bf16 output
        + 2 * (H_P * IN_P + H_P * H_P + OUT_P * H_P)   # bf16 weights
        + 4 * (2 * H_P + OUT_P)                        # f32 biases
    )

    out = pl.pallas_call(
        dqn_kernel,
        out_shape=jax.ShapeDtypeStruct((OUT_P, N_pad), jnp.bfloat16),
        grid=(grid_n,),
        in_specs=[
            pl.BlockSpec((IN_P, tile_n), lambda i: (0, i)),   # x^T tile (lane-dense batch)
            pl.BlockSpec((H_P, IN_P), lambda i: (0, 0)),      # W0  (VMEM-resident)
            pl.BlockSpec((H_P, 1), lambda i: (0, 0)),         # b0
            pl.BlockSpec((H_P, H_P), lambda i: (0, 0)),       # W1
            pl.BlockSpec((H_P, 1), lambda i: (0, 0)),         # b1
            pl.BlockSpec((OUT_P, H_P), lambda i: (0, 0)),     # Wp
            pl.BlockSpec((OUT_P, 1), lambda i: (0, 0)),       # bp
        ],
        out_specs=pl.BlockSpec((OUT_P, tile_n), lambda i: (0, i)),
        compiler_params=pltpu.CompilerParams(
            dimension_semantics=("parallel",),
        ),
        cost_estimate=pl.CostEstimate(
            flops=flops,
            transcendentals=transcendentals,
            bytes_accessed=bytes_accessed,
        ),
    )(xt, w0p, b0p, w1p, b1p, wpp, bpp)

    # Drop padding, transpose back to batch-major f32 (slice + T + cast fuse into one pass),
    # matching PyTorch's x.view(1, -1, n_outputs).
    return out[:n_outputs, :N].T.astype(jnp.float32).reshape(1, N, n_outputs)


def init_dqn_params(key, n_inputs, n_outputs, hidden_size=64):
    """Deterministic synthetic parameters with PyTorch-style uniform(-1/sqrt(h), 1/sqrt(h)) ranges.

    Weights are stored PyTorch-native as (out_features, in_features); RNN input/hidden biases for
    each layer are pre-summed (b_ih + b_hh) since that is all that survives a single step from a
    zero initial hidden state.
    """
    k = jax.random.split(key, 10)
    bound_rnn = 1.0 / jnp.sqrt(hidden_size)
    bound_lin = 1.0 / jnp.sqrt(hidden_size)

    # Layer 0: W_ih0 (hidden, n_inputs); b_ih0 + b_hh0
    w0 = jax.random.uniform(k[0], (hidden_size, n_inputs), jnp.float32, -bound_rnn, bound_rnn)
    b0 = (jax.random.uniform(k[1], (hidden_size,), jnp.float32, -bound_rnn, bound_rnn)
          + jax.random.uniform(k[2], (hidden_size,), jnp.float32, -bound_rnn, bound_rnn))
    # TODO(synk): W_hh0 / W_hh1 are omitted because this forward always runs seq_len=1 with a
    # zero initial hidden state, so the recurrent weights never influence the output.

    # Layer 1: W_ih1 (hidden, hidden); b_ih1 + b_hh1
    w1 = jax.random.uniform(k[3], (hidden_size, hidden_size), jnp.float32, -bound_rnn, bound_rnn)
    b1 = (jax.random.uniform(k[4], (hidden_size,), jnp.float32, -bound_rnn, bound_rnn)
          + jax.random.uniform(k[5], (hidden_size,), jnp.float32, -bound_rnn, bound_rnn))

    # predictor: Linear(hidden, n_outputs)
    wp = jax.random.uniform(k[6], (n_outputs, hidden_size), jnp.float32, -bound_lin, bound_lin)
    bp = jax.random.uniform(k[7], (n_outputs,), jnp.float32, -bound_lin, bound_lin)

    return (w0, b0, w1, b1, wp, bp)


def dqn_reference(x, params, n_inputs, n_outputs):
    """Pure-JAX f32 reference of the same math for a correctness check."""
    xf = x.reshape(-1, n_inputs).astype(jnp.float32)
    w0, b0, w1, b1, wp, bp = params
    h0 = jnp.tanh(xf @ w0.T + b0)
    h1 = jnp.tanh(h0 @ w1.T + b1)
    y = jax.nn.sigmoid(h1 @ wp.T + bp)
    return y.reshape(1, -1, n_outputs)


if __name__ == "__main__":
    n_inputs = 4
    n_outputs = 2
    hidden_size = 32
    batch = 16  # number of flattened "rows" the forward sees after x.view(1, -1, n_inputs)

    key = jax.random.PRNGKey(0)
    k_param, k_x = jax.random.split(key)

    params = init_dqn_params(k_param, n_inputs, n_outputs, hidden_size)
    x = jax.random.normal(k_x, (batch, n_inputs), dtype=jnp.float32)

    out = dqn_forward(x, params, n_inputs, n_outputs)
    out = jax.block_until_ready(out)

    ref = dqn_reference(x, params, n_inputs, n_outputs)
    assert out.shape == (1, batch, n_outputs), out.shape
    # bf16 matmul operands / transcendentals (f32 accumulation) -> relaxed tolerance vs f32 ref.
    assert jnp.allclose(out, ref, atol=2e-2, rtol=2e-2), "mismatch vs pure-JAX reference"

    print("KERNEL_OK")
</pallas_src>

<mosaic_0001>
module attributes {stable_mosaic.version = 11 : i64} {
  func.func @dqn_kernel(%arg0: i32, %arg1: memref<16x128xbf16, #tpu.memory_space<vmem>>, %arg2: memref<32x16xbf16, #tpu.memory_space<vmem>>, %arg3: memref<32x1xf32, #tpu.memory_space<vmem>>, %arg4: memref<32x32xbf16, #tpu.memory_space<vmem>>, %arg5: memref<32x1xf32, #tpu.memory_space<vmem>>, %arg6: memref<16x32xbf16, #tpu.memory_space<vmem>>, %arg7: memref<16x1xf32, #tpu.memory_space<vmem>>, %arg8: memref<16x128xbf16, #tpu.memory_space<vmem>>) attributes {dimension_semantics = [#tpu.dimension_semantics<parallel>], iteration_bounds = array<i64: 1>, scalar_prefetch = 0 : i64, scratch_operands = 0 : i64, tpu.core_type = #tpu.core_type<tc>, window_params = [{transform_indices = @transform_0, window_bounds = array<i64: 16, 128>}, {pipeline_mode = #tpu.pipeline_mode<synchronous>, transform_indices = @transform_1, window_bounds = array<i64: 32, 16>}, {pipeline_mode = #tpu.pipeline_mode<synchronous>, transform_indices = @transform_2, window_bounds = array<i64: 32, 1>}, {pipeline_mode = #tpu.pipeline_mode<synchronous>, transform_indices = @transform_3, window_bounds = array<i64: 32, 32>}, {pipeline_mode = #tpu.pipeline_mode<synchronous>, transform_indices = @transform_4, window_bounds = array<i64: 32, 1>}, {pipeline_mode = #tpu.pipeline_mode<synchronous>, transform_indices = @transform_5, window_bounds = array<i64: 16, 32>}, {pipeline_mode = #tpu.pipeline_mode<synchronous>, transform_indices = @transform_6, window_bounds = array<i64: 16, 1>}, {transform_indices = @transform_7, window_bounds = array<i64: 16, 128>}]} {
    %c0 = arith.constant 0 : index
    %c0_0 = arith.constant 0 : index
    %0 = vector.load %arg1[%c0, %c0_0] : memref<16x128xbf16, #tpu.memory_space<vmem>>, vector<16x128xbf16>
    %c0_1 = arith.constant 0 : index
    %c0_2 = arith.constant 0 : index
    %1 = vector.load %arg2[%c0_1, %c0_2] : memref<32x16xbf16, #tpu.memory_space<vmem>>, vector<32x16xbf16>
    %cst = arith.constant dense<0.000000e+00> : vector<32x128xf32>
    %2 = tpu.matmul %1, %0, %cst {dimension_numbers = #tpu.dot_dimension_numbers<[1], [0], [0], [1], [0, 0, 1, 1], [], []>} : vector<32x16xbf16>, vector<16x128xbf16>, vector<32x128xf32> -> vector<32x128xf32>
    %c0_3 = arith.constant 0 : index
    %c0_4 = arith.constant 0 : index
    %3 = vector.load %arg3[%c0_3, %c0_4] : memref<32x1xf32, #tpu.memory_space<vmem>>, vector<32x1xf32>
    %4 = vector.broadcast %3 : vector<32x1xf32> to vector<32x128xf32>
    %5 = arith.addf %2, %4 : vector<32x128xf32>
    %6 = arith.truncf %5 : vector<32x128xf32> to vector<32x128xbf16>
    %7 = math.tanh %6 : vector<32x128xbf16>
    %c0_5 = arith.constant 0 : index
    %c0_6 = arith.constant 0 : index
    %8 = vector.load %arg4[%c0_5, %c0_6] : memref<32x32xbf16, #tpu.memory_space<vmem>>, vector<32x32xbf16>
    %cst_7 = arith.constant dense<0.000000e+00> : vector<32x128xf32>
    %9 = tpu.matmul %8, %7, %cst_7 {dimension_numbers = #tpu.dot_dimension_numbers<[1], [0], [0], [1], [0, 0, 1, 1], [], []>} : vector<32x32xbf16>, vector<32x128xbf16>, vector<32x128xf32> -> vector<32x128xf32>
    %c0_8 = arith.constant 0 : index
    %c0_9 = arith.constant 0 : index
    %10 = vector.load %arg5[%c0_8, %c0_9] : memref<32x1xf32, #tpu.memory_space<vmem>>, vector<32x1xf32>
    %11 = vector.broadcast %10 : vector<32x1xf32> to vector<32x128xf32>
    %12 = arith.addf %9, %11 : vector<32x128xf32>
    %13 = arith.truncf %12 : vector<32x128xf32> to vector<32x128xbf16>
    %14 = math.tanh %13 : vector<32x128xbf16>
    %c0_10 = arith.constant 0 : index
    %c0_11 = arith.constant 0 : index
    %15 = vector.load %arg6[%c0_10, %c0_11] : memref<16x32xbf16, #tpu.memory_space<vmem>>, vector<16x32xbf16>
    %cst_12 = arith.constant dense<0.000000e+00> : vector<16x128xf32>
    %16 = tpu.matmul %15, %14, %cst_12 {dimension_numbers = #tpu.dot_dimension_numbers<[1], [0], [0], [1], [0, 0, 1, 1], [], []>} : vector<16x32xbf16>, vector<32x128xbf16>, vector<16x128xf32> -> vector<16x128xf32>
    %c0_13 = arith.constant 0 : index
    %c0_14 = arith.constant 0 : index
    %17 = vector.load %arg7[%c0_13, %c0_14] : memref<16x1xf32, #tpu.memory_space<vmem>>, vector<16x1xf32>
    %18 = vector.broadcast %17 : vector<16x1xf32> to vector<16x128xf32>
    %19 = arith.addf %16, %18 : vector<16x128xf32>
    %20 = arith.negf %19 : vector<16x128xf32>
    %21 = math.exp %20 : vector<16x128xf32>
    %cst_15 = arith.constant 1.000000e+00 : f32
    %22 = vector.broadcast %cst_15 : f32 to vector<16x128xf32>
    %23 = arith.addf %22, %21 : vector<16x128xf32>
    %24 = arith.divf %22, %23 : vector<16x128xf32>
    %25 = arith.truncf %24 : vector<16x128xf32> to vector<16x128xbf16>
    %c0_16 = arith.constant 0 : index
    %c0_17 = arith.constant 0 : index
    %26 = vector.load %arg8[%c0_16, %c0_17] : memref<16x128xbf16, #tpu.memory_space<vmem>>, vector<16x128xbf16>
    tpu.vector_store %arg8[%c0_16, %c0_17], %25 {strides = array<i32>} : memref<16x128xbf16, #tpu.memory_space<vmem>>, vector<16x128xbf16>,
    return
  }
  func.func @transform_0(%arg0: i32) -> (i32, i32) {
    %c0_i32 = arith.constant 0 : i32
    %c0_i32_0 = arith.constant 0 : i32
    return %c0_i32, %arg0 : i32, i32
  }
  func.func @transform_1(%arg0: i32) -> (i32, i32) {
    %c0_i32 = arith.constant 0 : i32
    %c0_i32_0 = arith.constant 0 : i32
    %c0_i32_1 = arith.constant 0 : i32
    return %c0_i32, %c0_i32_0 : i32, i32
  }
  func.func @transform_2(%arg0: i32) -> (i32, i32) {
    %c0_i32 = arith.constant 0 : i32
    %c0_i32_0 = arith.constant 0 : i32
    %c0_i32_1 = arith.constant 0 : i32
    return %c0_i32, %c0_i32_0 : i32, i32
  }
  func.func @transform_3(%arg0: i32) -> (i32, i32) {
    %c0_i32 = arith.constant 0 : i32
    %c0_i32_0 = arith.constant 0 : i32
    %c0_i32_1 = arith.constant 0 : i32
    return %c0_i32, %c0_i32_0 : i32, i32
  }
  func.func @transform_4(%arg0: i32) -> (i32, i32) {
    %c0_i32 = arith.constant 0 : i32
    %c0_i32_0 = arith.constant 0 : i32
    %c0_i32_1 = arith.constant 0 : i32
    return %c0_i32, %c0_i32_0 : i32, i32
  }
  func.func @transform_5(%arg0: i32) -> (i32, i32) {
    %c0_i32 = arith.constant 0 : i32
    %c0_i32_0 = arith.constant 0 : i32
    %c0_i32_1 = arith.constant 0 : i32
    return %c0_i32, %c0_i32_0 : i32, i32
  }
  func.func @transform_6(%arg0: i32) -> (i32, i32) {
    %c0_i32 = arith.constant 0 : i32
    %c0_i32_0 = arith.constant 0 : i32
    %c0_i32_1 = arith.constant 0 : i32
    return %c0_i32, %c0_i32_0 : i32, i32
  }
  func.func @transform_7(%arg0: i32) -> (i32, i32) {
    %c0_i32 = arith.constant 0 : i32
    %c0_i32_0 = arith.constant 0 : i32
    return %c0_i32, %arg0 : i32, i32
  }
}

</mosaic_0001>

<llo_original>
// kernel: tpu_custom_call.1
$region0: #{tpu_custom_call.1}
  #allocation0 [shape = 'u32[]', space=smem, size = 0x4, offset = 0x4, fixed_abs, tag = 'smem constant byte address 0x4 - core index']
  #allocation1 [shape = 'u32[144,128]{1,0:T(1,128)}', space=vmem, size = 0x12000, scoped, tag = 'internal scratch']
  %s0 = inlined_call_operand.vmem [shape: bf16[16,128], index: 0, kind: input, shape index: {}]
  %s1 = inlined_call_operand.vmem [shape: bf16[32,16], index: 1, kind: input, shape index: {}]
  %s2 = inlined_call_operand.vmem [shape: f32[32,1], index: 2, kind: input, shape index: {}]
  %s3 = inlined_call_operand.vmem [shape: bf16[32,32], index: 3, kind: input, shape index: {}]
  %s4 = inlined_call_operand.vmem [shape: f32[32,1], index: 4, kind: input, shape index: {}]
  %s5 = inlined_call_operand.vmem [shape: bf16[16,32], index: 5, kind: input, shape index: {}]
  %s6 = inlined_call_operand.vmem [shape: f32[16,1], index: 6, kind: input, shape index: {}]
  %s7 = inlined_call_operand.hbm [shape: bf16[16,128], index: 7, kind: output, shape index: {}]
  %s8 = sld [smem:[#allocation0]]
  $region38: #{tpu_custom_call.1} parent=0
    _
  %s10 = ssub.s32 1, %s8
  %s11 = scalar_select 0, %s10, %s8
  $region1: #{tpu_custom_call.1} parent=0
    #allocation2 [shape = 'u8[4096]{0}', space=vmem, size = 0x1000, scoped, tag = 'output window, operand 0, single buffered']
    #allocation3 [shape = 's32[1]{0}', space=sflag, size = 0x4, scoped, tag = 'scoped memory for tpu_custom_call.1']
    %12 = vsyncpa [#allocation3], 0
    // Predicated region
    $region2: #{tpu_custom_call.1} parent=1 // pred_check
      _
    $region3: #{tpu_custom_call.1} parent=1 // pred_check_branch
      %14 = sbr.rel (0) target = $region5
    $region4: #{tpu_custom_call.1} parent=1 // pred_region
      _
    $region5: #{tpu_custom_call.1} parent=1 // pred_fallthru
      _
    // Predicated region
    $region6: #{tpu_custom_call.1} parent=1 // pred_check
      _
    $region7: #{tpu_custom_call.1} parent=1 // pred_check_branch
      %16 = sbr.rel (0) target = $region9
    $region8: #{tpu_custom_call.1} parent=1 // pred_region
      _
    $region9: #{tpu_custom_call.1} parent=1 // pred_fallthru
      _
    // Predicated region
    $region10: #{tpu_custom_call.1} parent=1 // pred_check
      _
    $region11: #{tpu_custom_call.1} parent=1 // pred_check_branch
      %18 = sbr.rel (0) target = $region13
    $region12: #{tpu_custom_call.1} parent=1 // pred_region
      _
    $region13: #{tpu_custom_call.1} parent=1 // pred_fallthru
      _
    // Predicated region
    $region14: #{tpu_custom_call.1} parent=1 // pred_check
      _
    $region15: #{tpu_custom_call.1} parent=1 // pred_check_branch
      %20 = sbr.rel (0) target = $region17
    $region16: #{tpu_custom_call.1} parent=1 // pred_region
      _
    $region17: #{tpu_custom_call.1} parent=1 // pred_fallthru
      _
    // Predicated region
    $region18: #{tpu_custom_call.1} parent=1 // pred_check
      _
    $region19: #{tpu_custom_call.1} parent=1 // pred_check_branch
      %22 = sbr.rel (0) target = $region21
    $region20: #{tpu_custom_call.1} parent=1 // pred_region
      _
    $region21: #{tpu_custom_call.1} parent=1 // pred_fallthru
      _
    // Predicated region
    $region22: #{tpu_custom_call.1} parent=1 // pred_check
      _
    $region23: #{tpu_custom_call.1} parent=1 // pred_check_branch
      %24 = sbr.rel (0) target = $region25
    $region24: #{tpu_custom_call.1} parent=1 // pred_region
      _
    $region25: #{tpu_custom_call.1} parent=1 // pred_fallthru
      _
    // Predicated region
    $region26: #{tpu_custom_call.1} parent=1 // pred_check
      _
    $region27: #{tpu_custom_call.1} parent=1 // pred_check_branch
      %26 = sbr.rel (0) target = $region29
    $region28: #{tpu_custom_call.1} parent=1 // pred_region
      _
    $region29: #{tpu_custom_call.1} parent=1 // pred_fallthru
      _
    %v28 = vld [vmem:[%s0] sm:$0xf]
    %v29 = vld [vmem:[%s0 + $0x4] sm:$0xf]
    %v30 = vld [vmem:[%s1] sm:$0xf]
    %v31 = vld [vmem:[%s1 + $0x4] sm:$0xf]
    %v32 = vld [vmem:[%s1 + $0x8] sm:$0xf]
    %v33 = vld [vmem:[%s1 + $0xc] sm:$0xf]
    %v34 = vld [vmem:[%s2] sm:$0xff]
    %v35 = vld [vmem:[%s2 + $0x8] sm:$0xff]
    %v36 = vld [vmem:[%s2 + $0x10] sm:$0xff]
    %v37 = vld [vmem:[%s2 + $0x18] sm:$0xff]
    %39 = vset.pattern.permute.xlu0 0
    %40 = vperm.xlu0 %39, %v34
    %v41 = vpop.permute.xlu0 %40
    %44 = vset.pattern.permute.xlu0 0
    %45 = vperm.xlu0 %44, %v35
    %v46 = vpop.permute.xlu0 %45
    %49 = vset.pattern.permute.xlu0 0
    %50 = vperm.xlu0 %49, %v36
    %v51 = vpop.permute.xlu0 %50
    %54 = vset.pattern.permute.xlu0 0
    %55 = vperm.xlu0 %54, %v37
    %v56 = vpop.permute.xlu0 %55
    %v62 = vunpack.c.l.b16 %v30
    %v63 = vunpack.c.l.b16 %v31
    %v64 = vunpack.c.l.b16 %v32
    %v65 = vunpack.c.l.b16 %v33
    %v66 = vpack.c.b16 %v63, %v62
    %v67 = vpack.c.b16 %v65, %v64
    %v70 = vunpack.c.l.b16 %v28
    %v71 = vunpack.c.l.b16 %v29
    %v72 = vpack.c.b16 %v71, %v70
    %vm74 = vcmask 130048
    %v76 = vsel %vm74, %v66, 0
    %v79 = vsel %vm74, %v67, 0
    %81 = vmatprep.subr.bf16.mxu0 0
    %82 = vmatpush1.bf16.msra.mxu0 0
    %83 = vmatprep.subr.bf16.mxu0 0
    %84 = vmatpush1.bf16.msra.mxu0 0
    %85 = vmatprep.subr.bf16.mxu0 0
    %86 = vmatpush1.bf16.msra.mxu0 0
    %87 = vmatprep.subr.bf16.mxu0 0
    %88 = vmatpush1.bf16.msra.mxu0 0
    %89 = vmatprep.subr.bf16.mxu0 0
    %90 = vmatpush1.bf16.msra.mxu0 0
    %91 = vmatprep.subr.bf16.mxu0 0
    %92 = vmatpush1.bf16.msra.mxu0 0
    %93 = vmatprep.subr.bf16.mxu0 0
    %94 = vmatpush1.bf16.msra.mxu0 0
    %95 = vmatprep.subr.bf16.mxu0 0
    %96 = vmatpush1.bf16.msra.mxu0 %v72
    %97 = vmatprep.subr.bf16.mxu0 0
    %98 = vmatpush2.bf16.msra.mxu0 0
    %99 = vmatprep.subr.bf16.mxu0 0
    %100 = vmatpush2.bf16.msra.mxu0 0
    %101 = vmatprep.subr.bf16.mxu0 0
    %102 = vmatpush2.bf16.msra.mxu0 0
    %103 = vmatprep.subr.bf16.mxu0 0
    %104 = vmatpush2.bf16.msra.mxu0 0
    %105 = vmatprep.subr.bf16.mxu0 0
    %106 = vmatpush2.bf16.msra.mxu0 0
    %107 = vmatprep.subr.bf16.mxu0 0
    %108 = vmatpush2.bf16.msra.mxu0 0
    %109 = vmatprep.subr.bf16.mxu0 0
    %110 = vmatpush2.bf16.msra.mxu0 0
    %111 = vmatprep.subr.bf16.mxu0 0
    %112 = vmatpush2.bf16.msra.mxu0 0
    %113 = vmatprep.mubr.bf16.mxu0 0
    %114 = vmatmul.mubr.bf16.gmra.mxu0 %v76
    %v115 = vpop.f32.mrf.mxu0
    %v116 = vadd.f32 %v41, %v115
    %v117 = vpop.f32.mrf.mxu0
    %v118 = vpop.f32.mrf.mxu0
    %v119 = vadd.f32 %v46, %v118
    %v120 = vpop.f32.mrf.mxu0
    %121 = vmatprep.mubr.bf16.mxu0 0
    %122 = vmatmul.mubr.bf16.gmra.mxu0 %v79
    %v123 = vpop.f32.mrf.mxu0
    %v124 = vadd.f32 %v51, %v123
    %v125 = vpop.f32.mrf.mxu0
    %v126 = vpop.f32.mrf.mxu0
    %v127 = vadd.f32 %v56, %v126
    %v128 = vpop.f32.mrf.mxu0
    %129 = vdwg.mxu0
    %v130 = vpack.c.bf16 %v119, %v116
    %v131 = vpack.c.bf16 %v127, %v124
    %v132 = vtanh.bf16.pop %v130
    %v133 = vtanh.bf16.pop %v131
    %v134 = vld [vmem:[%s3] sm:$0xf]
    %v135 = vld [vmem:[%s3 + $0x4] sm:$0xf]
    %v136 = vld [vmem:[%s3 + $0x8] sm:$0xf]
    %v137 = vld [vmem:[%s3 + $0xc] sm:$0xf]
    %v138 = vld [vmem:[%s4] sm:$0xff]
    %v139 = vld [vmem:[%s4 + $0x8] sm:$0xff]
    %v140 = vld [vmem:[%s4 + $0x10] sm:$0xff]
    %v141 = vld [vmem:[%s4 + $0x18] sm:$0xff]
    %143 = vset.pattern.permute.xlu0 0
    %144 = vperm.xlu0 %143, %v138
    %v145 = vpop.permute.xlu0 %144
    %148 = vset.pattern.permute.xlu0 0
    %149 = vperm.xlu0 %148, %v139
    %v150 = vpop.permute.xlu0 %149
    %153 = vset.pattern.permute.xlu0 0
    %154 = vperm.xlu0 %153, %v140
    %v155 = vpop.permute.xlu0 %154
    %158 = vset.pattern.permute.xlu0 0
    %159 = vperm.xlu0 %158, %v141
    %v160 = vpop.permute.xlu0 %159
    %v166 = vunpack.c.l.b16 %v134
    %v167 = vunpack.c.l.b16 %v135
    %v168 = vunpack.c.l.b16 %v136
    %v169 = vunpack.c.l.b16 %v137
    %v170 = vpack.c.b16 %v167, %v166
    %v171 = vpack.c.b16 %v169, %v168
    %vm172 = vcmask 261120
    %v174 = vsel %vm172, %v170, 0
    %v177 = vsel %vm172, %v171, 0
    %179 = vmatprep.subr.bf16.mxu0 0
    %180 = vmatpush1.bf16.msra.mxu0 0
    %181 = vmatprep.subr.bf16.mxu0 0
    %182 = vmatpush1.bf16.msra.mxu0 0
    %183 = vmatprep.subr.bf16.mxu0 0
    %184 = vmatpush1.bf16.msra.mxu0 0
    %185 = vmatprep.subr.bf16.mxu0 0
    %186 = vmatpush1.bf16.msra.mxu0 0
    %187 = vmatprep.subr.bf16.mxu0 0
    %188 = vmatpush1.bf16.msra.mxu0 0
    %189 = vmatprep.subr.bf16.mxu0 0
    %190 = vmatpush1.bf16.msra.mxu0 0
    %191 = vmatprep.subr.bf16.mxu0 0
    %192 = vmatpush1.bf16.msra.mxu0 %v133
    %193 = vmatprep.subr.bf16.mxu0 0
    %194 = vmatpush1.bf16.msra.mxu0 %v132
    %195 = vmatprep.subr.bf16.mxu0 0
    %196 = vmatpush2.bf16.msra.mxu0 0
    %197 = vmatprep.subr.bf16.mxu0 0
    %198 = vmatpush2.bf16.msra.mxu0 0
    %199 = vmatprep.subr.bf16.mxu0 0
    %200 = vmatpush2.bf16.msra.mxu0 0
    %201 = vmatprep.subr.bf16.mxu0 0
    %202 = vmatpush2.bf16.msra.mxu0 0
    %203 = vmatprep.subr.bf16.mxu0 0
    %204 = vmatpush2.bf16.msra.mxu0 0
    %205 = vmatprep.subr.bf16.mxu0 0
    %206 = vmatpush2.bf16.msra.mxu0 0
    %207 = vmatprep.subr.bf16.mxu0 0
    %208 = vmatpush2.bf16.msra.mxu0 0
    %209 = vmatprep.subr.bf16.mxu0 0
    %210 = vmatpush2.bf16.msra.mxu0 0
    %211 = vmatprep.mubr.bf16.mxu0 0
    %212 = vmatmul.mubr.bf16.gmra.mxu0 %v174
    %v213 = vpop.f32.mrf.mxu0
    %v214 = vadd.f32 %v145, %v213
    %v215 = vpop.f32.mrf.mxu0
    %v216 = vpop.f32.mrf.mxu0
    %v217 = vadd.f32 %v150, %v216
    %v218 = vpop.f32.mrf.mxu0
    %219 = vmatprep.mubr.bf16.mxu0 0
    %220 = vmatmul.mubr.bf16.gmra.mxu0 %v177
    %v221 = vpop.f32.mrf.mxu0
    %v222 = vadd.f32 %v155, %v221
    %v223 = vpop.f32.mrf.mxu0
    %v224 = vpop.f32.mrf.mxu0
    %v225 = vadd.f32 %v160, %v224
    %v226 = vpop.f32.mrf.mxu0
    %227 = vdwg.mxu0
    %v228 = vpack.c.bf16 %v217, %v214
    %v229 = vpack.c.bf16 %v225, %v222
    %v230 = vtanh.bf16.pop %v228
    %v231 = vtanh.bf16.pop %v229
    %v232 = vld [vmem:[%s5] sm:$0xf]
    %v233 = vld [vmem:[%s5 + $0x4] sm:$0xf]
    %v234 = vld [vmem:[%s6] sm:$0xff]
    %v235 = vld [vmem:[%s6 + $0x8] sm:$0xff]
    %237 = vset.pattern.permute.xlu0 0
    %238 = vperm.xlu0 %237, %v234
    %v239 = vpop.permute.xlu0 %238
    %242 = vset.pattern.permute.xlu0 0
    %243 = vperm.xlu0 %242, %v235
    %v244 = vpop.permute.xlu0 %243
    %v248 = vunpack.c.l.b16 %v232
    %v249 = vunpack.c.l.b16 %v233
    %v250 = vpack.c.b16 %v249, %v248
    %v252 = vsel %vm172, %v250, 0
    %254 = vmatprep.subr.bf16.mxu0 0
    %255 = vmatpush1.bf16.msra.mxu0 0
    %256 = vmatprep.subr.bf16.mxu0 0
    %257 = vmatpush1.bf16.msra.mxu0 0
    %258 = vmatprep.subr.bf16.mxu0 0
    %259 = vmatpush1.bf16.msra.mxu0 0
    %260 = vmatprep.subr.bf16.mxu0 0
    %261 = vmatpush1.bf16.msra.mxu0 0
    %262 = vmatprep.subr.bf16.mxu0 0
    %263 = vmatpush1.bf16.msra.mxu0 0
    %264 = vmatprep.subr.bf16.mxu0 0
    %265 = vmatpush1.bf16.msra.mxu0 0
    %266 = vmatprep.subr.bf16.mxu0 0
    %267 = vmatpush1.bf16.msra.mxu0 %v231
    %268 = vmatprep.subr.bf16.mxu0 0
    %269 = vmatpush1.bf16.msra.mxu0 %v230
    %270 = vmatprep.subr.bf16.mxu0 0
    %271 = vmatpush2.bf16.msra.mxu0 0
    %272 = vmatprep.subr.bf16.mxu0 0
    %273 = vmatpush2.bf16.msra.mxu0 0
    %274 = vmatprep.subr.bf16.mxu0 0
    %275 = vmatpush2.bf16.msra.mxu0 0
    %276 = vmatprep.subr.bf16.mxu0 0
    %277 = vmatpush2.bf16.msra.mxu0 0
    %278 = vmatprep.subr.bf16.mxu0 0
    %279 = vmatpush2.bf16.msra.mxu0 0
    %280 = vmatprep.subr.bf16.mxu0 0
    %281 = vmatpush2.bf16.msra.mxu0 0
    %282 = vmatprep.subr.bf16.mxu0 0
    %283 = vmatpush2.bf16.msra.mxu0 0
    %284 = vmatprep.subr.bf16.mxu0 0
    %285 = vmatpush2.bf16.msra.mxu0 0
    %286 = vmatprep.mubr.bf16.mxu0 0
    %287 = vmatmul.mubr.bf16.gmra.mxu0 %v252
    %v288 = vpop.f32.mrf.mxu0
    %v289 = vadd.f32 %v239, %v288
    %v290 = vpop.f32.mrf.mxu0
    %v291 = vpop.f32.mrf.mxu0
    %v292 = vadd.f32 %v244, %v291
    %v293 = vpop.f32.mrf.mxu0
    %294 = vdwg.mxu0
    %v295 = vxor.u32 %v289, 2147483648
    %v296 = vxor.u32 %v292, 2147483648
    %v297 = vmul.f32 %v295, 1.442695
    %v298 = vpow.pop %v297
    %v299 = vmul.f32 %v296, 1.442695
    %v300 = vpow.pop %v299
    %v301 = vadd.f32 %v298, 1.0
    %v302 = vadd.f32 %v300, 1.0
    %v303 = vrcp.pop %v301
    %v304 = vmul.f32 1.0, %v303
    %v305 = vrcp.pop %v302
    %v306 = vmul.f32 1.0, %v305
    %v307 = vpack.c.bf16 %v306, %v304
    %v309 = vunpack.c.l.b16 %v307
    %v310 = vunpack.c.h.b16 %v307
    %v311 = vpack.c.b16 %v309, %v309
    %v312 = vpack.c.b16 %v310, %v310
    %315 = vst [vmem:[#allocation2] sm:$0xf] %v311
    %316 = vst [vmem:[#allocation2 + $0x4] sm:$0xf] %v312
    // Predicated region
    $region30: #{tpu_custom_call.1} parent=1 // pred_check
      _
    $region31: #{tpu_custom_call.1} parent=1 // pred_check_branch
      %318 = sbr.rel (0) target = $region33
    $region32: #{tpu_custom_call.1} parent=1 // pred_region
      %s320 = ssub.s32 128, 128
      %321 = vsyncadd [#allocation3], %s320
      %s322 = sshll.u32 [#allocation2], 4
      %s323 = int_to_ptr.vmem [resolvable:$true] %s322
      %328 = dma.vmem_to_hbm [thread:$0]  %s323, 128, %s7, [#allocation3], 64, 64, 4
    $region33: #{tpu_custom_call.1} parent=1 // pred_fallthru
      _
    // Predicated region
    $region34: #{tpu_custom_call.1} parent=1 // pred_check
      _
    $region35: #{tpu_custom_call.1} parent=1 // pred_check_branch
      %330 = sbr.rel (0) target = $region37
    $region36: #{tpu_custom_call.1} parent=1 // pred_region
      %331 = dma.done [#allocation3], 128
    $region37: #{tpu_custom_call.1} parent=1 // pred_fallthru
      _
    %332 = vsyncpa [#allocation3], 1

</llo_original>
